<compile_context>
chip_gen: v7x
topology: tpu7x:2x2x1
jax: 0.10.0
libtpu: 0.0.40
codegen_flags: <defaults>
</compile_context>

<pallas_src>
import jax
import jax.numpy as jnp
from jax import lax
from jax.experimental import pallas as pl
from jax.experimental.pallas import tpu as pltpu


def _make_kernel(b_blk, c_in, c_out, l_out, k_taps, pad_l):
    def kernel(x_ref, w_ref, shift_ref, o_ref):
        # x_ref:     (B_blk, C_in, L)   raw input block, lane-dense (L % 128 == 0)
        # w_ref:     (C_out, K*C_in)    conv weights, BN scale folded in,
        #                               rows ordered [tap0 | tap1 | ...]
        # shift_ref: (C_out, 1)         folded shift (conv bias + BN beta/mean)
        # o_ref:     (B_blk, C_out, L)
        w2 = w_ref[...]
        shift = shift_ref[...]
        lane = lax.broadcasted_iota(jnp.int32, (c_in, l_out), 1)

        for bi in range(b_blk):              # static unroll; B_blk is small
            x = x_ref[bi]                    # (C_in, L)
            taps = []
            for kk in range(k_taps):         # static unroll; K is tiny
                d = kk - pad_l               # source offset of this tap
                if d == 0:
                    taps.append(x)
                    continue
                # xs[:, t] = x[:, t + d], zero where t + d is out of [0, L).
                xs = pltpu.roll(x, (-d) % l_out, 1)
                if d > 0:
                    xs = jnp.where(lane < l_out - d, xs, jnp.zeros_like(xs))
                else:
                    xs = jnp.where(lane >= -d, xs, jnp.zeros_like(xs))
                taps.append(xs)
            # im2col operand: (K*C_in, L), single deep MXU matmul.
            xcol = jnp.concatenate(taps, axis=0)
            acc = jnp.dot(w2, xcol, preferred_element_type=jnp.float32)
            y = acc + shift
            o_ref[bi] = jnp.maximum(y, 0.0).astype(o_ref.dtype)

    return kernel


def lstm_conv_block(x, w, b, gamma, beta, running_mean, running_var, *,
                    eps=1e-3, batch_block=None):
    """relu(batchnorm1d(conv1d(x, w, b, padding='same'))), BN in eval mode."""
    n, c_in, l = x.shape
    c_out, c_in_w, k = w.shape
    assert c_in_w == c_in
    assert l % 128 == 0, "L must be lane-dense (multiple of 128) for this kernel"
    assert c_in % 8 == 0, "C_in must be sublane-aligned (multiple of 8)"

    # PyTorch 'same' padding: left = (K-1)//2 (handled in-kernel, no jnp.pad).
    pad_l = (k - 1) // 2

    # Fold conv bias + BN(eval) into a per-channel weight scale and a shift.
    inv_std = lax.rsqrt(running_var.astype(jnp.float32) + eps)
    scale = gamma.astype(jnp.float32) * inv_std                       # (C_out,)
    shift = (beta.astype(jnp.float32)
             + (b.astype(jnp.float32) - running_mean.astype(jnp.float32)) * scale)
    shift = shift.reshape(c_out, 1)

    # (C_out, C_in, K) -> (C_out, K*C_in); row-block k holds tap k's (C_out, C_in)
    # matrix, matching the in-kernel im2col row order. BN scale folded in.
    w2 = jnp.transpose(w.astype(jnp.float32), (0, 2, 1)).reshape(c_out, k * c_in)
    w2 = w2 * scale[:, None]

    # Batch blocking: fewer, fatter grid steps. Keep >=2 steps when possible so
    # v7x's two TensorCores both get work; cap block for v7x's smaller VMEM.
    if batch_block is None:
        batch_block = n // 2 if (n % 2 == 0 and n >= 2) else n
        batch_block = max(1, min(batch_block, 32))
        while n % batch_block:
            batch_block -= 1
    assert n % batch_block == 0
    grid = (n // batch_block,)

    kernel = _make_kernel(batch_block, c_in, c_out, l, k, pad_l)

    itemsize = jnp.dtype(jnp.float32).itemsize
    cost = pl.CostEstimate(
        flops=2 * n * c_out * (k * c_in) * l,
        transcendentals=0,
        bytes_accessed=(n * c_in * l + c_out * k * c_in + c_out + n * c_out * l)
        * itemsize,
    )

    out = pl.pallas_call(
        kernel,
        out_shape=jax.ShapeDtypeStruct((n, c_out, l), x.dtype),
        grid_spec=pltpu.PrefetchScalarGridSpec(
            num_scalar_prefetch=0,
            grid=grid,
            in_specs=[
                pl.BlockSpec((batch_block, c_in, l), lambda i: (i, 0, 0)),  # x
                pl.BlockSpec((c_out, k * c_in), lambda i: (0, 0)),          # weights
                pl.BlockSpec((c_out, 1), lambda i: (0, 0)),                 # shift
            ],
            out_specs=pl.BlockSpec((batch_block, c_out, l), lambda i: (i, 0, 0)),
        ),
        compiler_params=pltpu.CompilerParams(
            dimension_semantics=("parallel",)),
        cost_estimate=cost,
    )(x, w2, shift)
    return out


if __name__ == "__main__":
    key = jax.random.PRNGKey(0)
    kx, kw, kb, kg, kbe, km, kv = jax.random.split(key, 7)

    # Conv1d input is (batch, channels, length); L is a multiple of 128 so the
    # kernel's minor dim is lane-dense.
    N, C_IN, C_OUT, K, L = 4, 16, 32, 5, 256
    EPS = 1e-3  # matches nn.BatchNorm1d(no, eps=0.001)

    x = jax.random.normal(kx, (N, C_IN, L), dtype=jnp.float32)
    w = jax.random.normal(kw, (C_OUT, C_IN, K), dtype=jnp.float32) / (C_IN * K) ** 0.5
    b = 0.1 * jax.random.normal(kb, (C_OUT,), dtype=jnp.float32)
    gamma = 1.0 + 0.1 * jax.random.normal(kg, (C_OUT,), dtype=jnp.float32)
    beta = 0.1 * jax.random.normal(kbe, (C_OUT,), dtype=jnp.float32)
    running_mean = 0.1 * jax.random.normal(km, (C_OUT,), dtype=jnp.float32)
    running_var = jnp.abs(1.0 + 0.1 * jax.random.normal(kv, (C_OUT,), dtype=jnp.float32))

    out = lstm_conv_block(x, w, b, gamma, beta, running_mean, running_var, eps=EPS)
    out = jax.block_until_ready(out)

    # Pure-JAX reference of the PyTorch forward: Conv1d('same') -> BN(eval) -> ReLU.
    pad_l = (K - 1) // 2
    pad_r = (K - 1) - pad_l
    dn = lax.conv_dimension_numbers(x.shape, w.shape, ("NCH", "OIH", "NCH"))
    conv = lax.conv_general_dilated(
        x, w, window_strides=(1,), padding=[(pad_l, pad_r)],
        dimension_numbers=dn, precision=lax.Precision.HIGHEST)
    conv = conv + b[None, :, None]
    bn = (conv - running_mean[None, :, None]) / jnp.sqrt(running_var[None, :, None] + EPS)
    bn = bn * gamma[None, :, None] + beta[None, :, None]
    ref = jnp.maximum(bn, 0.0)

    assert out.shape == ref.shape, (out.shape, ref.shape)
    max_err = float(jnp.max(jnp.abs(out - ref)))
    assert jnp.allclose(out, ref, atol=1e-2, rtol=1e-2), f"max abs err {max_err}"

    print("KERNEL_OK")
</pallas_src>

<mosaic_0001>
module attributes {stable_mosaic.version = 11 : i64} {
  func.func @kernel(%arg0: i32, %arg1: memref<2x16x256xf32, #tpu.memory_space<vmem>>, %arg2: memref<32x80xf32, #tpu.memory_space<vmem>>, %arg3: memref<32x1xf32, #tpu.memory_space<vmem>>, %arg4: memref<2x32x256xf32, #tpu.memory_space<vmem>>) attributes {dimension_semantics = [#tpu.dimension_semantics<parallel>], iteration_bounds = array<i64: 2>, scalar_prefetch = 0 : i64, scratch_operands = 0 : i64, tpu.core_type = #tpu.core_type<tc>, window_params = [{transform_indices = @transform_0, window_bounds = array<i64: 2, 16, 256>}, {pipeline_mode = #tpu.pipeline_mode<synchronous>, transform_indices = @transform_1, window_bounds = array<i64: 32, 80>}, {pipeline_mode = #tpu.pipeline_mode<synchronous>, transform_indices = @transform_2, window_bounds = array<i64: 32, 1>}, {transform_indices = @transform_3, window_bounds = array<i64: 2, 32, 256>}]} {
    %c0 = arith.constant 0 : index
    %c0_0 = arith.constant 0 : index
    %0 = vector.load %arg2[%c0, %c0_0] : memref<32x80xf32, #tpu.memory_space<vmem>>, vector<32x80xf32>
    %c0_1 = arith.constant 0 : index
    %c0_2 = arith.constant 0 : index
    %1 = vector.load %arg3[%c0_1, %c0_2] : memref<32x1xf32, #tpu.memory_space<vmem>>, vector<32x1xf32>
    %2 = tpu.iota {dimensions = array<i32: 1>} : vector<16x256xi32>
    %c0_3 = arith.constant 0 : index
    %c0_4 = arith.constant 0 : index
    %c0_5 = arith.constant 0 : index
    %3 = vector.load %arg1[%c0_3, %c0_4, %c0_5] : memref<2x16x256xf32, #tpu.memory_space<vmem>>, vector<1x16x256xf32>
    %4 = vector.shape_cast %3 : vector<1x16x256xf32> to vector<16x256xf32>
    %c2_i32 = arith.constant 2 : i32
    %5 = tpu.dynamic_rotate %4 by %c2_i32 dim 1 : vector<16x256xf32>, i32 -> vector<16x256xf32>
    %c2_i32_6 = arith.constant 2 : i32
    %6 = vector.broadcast %c2_i32_6 : i32 to vector<16x256xi32>
    %7 = arith.cmpi sge, %2, %6 : vector<16x256xi32>
    %cst = arith.constant 0.000000e+00 : f32
    %8 = vector.broadcast %cst : f32 to vector<16x256xf32>
    %9 = arith.select %7, %5, %8 : vector<16x256xi1>, vector<16x256xf32>
    %c1_i32 = arith.constant 1 : i32
    %10 = tpu.dynamic_rotate %4 by %c1_i32 dim 1 : vector<16x256xf32>, i32 -> vector<16x256xf32>
    %c1_i32_7 = arith.constant 1 : i32
    %11 = vector.broadcast %c1_i32_7 : i32 to vector<16x256xi32>
    %12 = arith.cmpi sge, %2, %11 : vector<16x256xi32>
    %cst_8 = arith.constant 0.000000e+00 : f32
    %13 = vector.broadcast %cst_8 : f32 to vector<16x256xf32>
    %14 = arith.select %12, %10, %13 : vector<16x256xi1>, vector<16x256xf32>
    %c255_i32 = arith.constant 255 : i32
    %15 = tpu.dynamic_rotate %4 by %c255_i32 dim 1 : vector<16x256xf32>, i32 -> vector<16x256xf32>
    %c255_i32_9 = arith.constant 255 : i32
    %16 = vector.broadcast %c255_i32_9 : i32 to vector<16x256xi32>
    %17 = arith.cmpi slt, %2, %16 : vector<16x256xi32>
    %cst_10 = arith.constant 0.000000e+00 : f32
    %18 = vector.broadcast %cst_10 : f32 to vector<16x256xf32>
    %19 = arith.select %17, %15, %18 : vector<16x256xi1>, vector<16x256xf32>
    %c254_i32 = arith.constant 254 : i32
    %20 = tpu.dynamic_rotate %4 by %c254_i32 dim 1 : vector<16x256xf32>, i32 -> vector<16x256xf32>
    %c254_i32_11 = arith.constant 254 : i32
    %21 = vector.broadcast %c254_i32_11 : i32 to vector<16x256xi32>
    %22 = arith.cmpi slt, %2, %21 : vector<16x256xi32>
    %cst_12 = arith.constant 0.000000e+00 : f32
    %23 = vector.broadcast %cst_12 : f32 to vector<16x256xf32>
    %24 = arith.select %22, %20, %23 : vector<16x256xi1>, vector<16x256xf32>
    %25 = tpu.concatenate %9, %14, %4, %19, %24 in 0 : vector<16x256xf32>, vector<16x256xf32>, vector<16x256xf32>, vector<16x256xf32>, vector<16x256xf32> -> vector<80x256xf32>
    %cst_13 = arith.constant dense<0.000000e+00> : vector<32x256xf32>
    %26 = tpu.matmul %0, %25, %cst_13 {dimension_numbers = #tpu.dot_dimension_numbers<[1], [0], [0], [1], [0, 0, 1, 1], [], []>} : vector<32x80xf32>, vector<80x256xf32>, vector<32x256xf32> -> vector<32x256xf32>
    %27 = vector.broadcast %1 : vector<32x1xf32> to vector<32x256xf32>
    %28 = arith.addf %26, %27 : vector<32x256xf32>
    %cst_14 = arith.constant 0.000000e+00 : f32
    %29 = vector.broadcast %cst_14 : f32 to vector<32x256xf32>
    %30 = arith.maximumf %28, %29 : vector<32x256xf32>
    %c0_15 = arith.constant 0 : index
    %c0_16 = arith.constant 0 : index
    %c0_17 = arith.constant 0 : index
    %31 = vector.load %arg4[%c0_15, %c0_16, %c0_17] : memref<2x32x256xf32, #tpu.memory_space<vmem>>, vector<1x32x256xf32>
    %32 = vector.shape_cast %31 : vector<1x32x256xf32> to vector<32x256xf32>
    %33 = vector.shape_cast %30 : vector<32x256xf32> to vector<1x32x256xf32>
    tpu.vector_store %arg4[%c0_15, %c0_16, %c0_17], %33 {strides = array<i32>} : memref<2x32x256xf32, #tpu.memory_space<vmem>>, vector<1x32x256xf32>,
    %c1 = arith.constant 1 : index
    %c0_18 = arith.constant 0 : index
    %c0_19 = arith.constant 0 : index
    %34 = vector.load %arg1[%c1, %c0_18, %c0_19] : memref<2x16x256xf32, #tpu.memory_space<vmem>>, vector<1x16x256xf32>
    %35 = vector.shape_cast %34 : vector<1x16x256xf32> to vector<16x256xf32>
    %c2_i32_20 = arith.constant 2 : i32
    %36 = tpu.dynamic_rotate %35 by %c2_i32_20 dim 1 : vector<16x256xf32>, i32 -> vector<16x256xf32>
    %c2_i32_21 = arith.constant 2 : i32
    %37 = vector.broadcast %c2_i32_21 : i32 to vector<16x256xi32>
    %38 = arith.cmpi sge, %2, %37 : vector<16x256xi32>
    %cst_22 = arith.constant 0.000000e+00 : f32
    %39 = vector.broadcast %cst_22 : f32 to vector<16x256xf32>
    %40 = arith.select %38, %36, %39 : vector<16x256xi1>, vector<16x256xf32>
    %c1_i32_23 = arith.constant 1 : i32
    %41 = tpu.dynamic_rotate %35 by %c1_i32_23 dim 1 : vector<16x256xf32>, i32 -> vector<16x256xf32>
    %c1_i32_24 = arith.constant 1 : i32
    %42 = vector.broadcast %c1_i32_24 : i32 to vector<16x256xi32>
    %43 = arith.cmpi sge, %2, %42 : vector<16x256xi32>
    %cst_25 = arith.constant 0.000000e+00 : f32
    %44 = vector.broadcast %cst_25 : f32 to vector<16x256xf32>
    %45 = arith.select %43, %41, %44 : vector<16x256xi1>, vector<16x256xf32>
    %c255_i32_26 = arith.constant 255 : i32
    %46 = tpu.dynamic_rotate %35 by %c255_i32_26 dim 1 : vector<16x256xf32>, i32 -> vector<16x256xf32>
    %c255_i32_27 = arith.constant 255 : i32
    %47 = vector.broadcast %c255_i32_27 : i32 to vector<16x256xi32>
    %48 = arith.cmpi slt, %2, %47 : vector<16x256xi32>
    %cst_28 = arith.constant 0.000000e+00 : f32
    %49 = vector.broadcast %cst_28 : f32 to vector<16x256xf32>
    %50 = arith.select %48, %46, %49 : vector<16x256xi1>, vector<16x256xf32>
    %c254_i32_29 = arith.constant 254 : i32
    %51 = tpu.dynamic_rotate %35 by %c254_i32_29 dim 1 : vector<16x256xf32>, i32 -> vector<16x256xf32>
    %c254_i32_30 = arith.constant 254 : i32
    %52 = vector.broadcast %c254_i32_30 : i32 to vector<16x256xi32>
    %53 = arith.cmpi slt, %2, %52 : vector<16x256xi32>
    %cst_31 = arith.constant 0.000000e+00 : f32
    %54 = vector.broadcast %cst_31 : f32 to vector<16x256xf32>
    %55 = arith.select %53, %51, %54 : vector<16x256xi1>, vector<16x256xf32>
    %56 = tpu.concatenate %40, %45, %35, %50, %55 in 0 : vector<16x256xf32>, vector<16x256xf32>, vector<16x256xf32>, vector<16x256xf32>, vector<16x256xf32> -> vector<80x256xf32>
    %cst_32 = arith.constant dense<0.000000e+00> : vector<32x256xf32>
    %57 = tpu.matmul %0, %56, %cst_32 {dimension_numbers = #tpu.dot_dimension_numbers<[1], [0], [0], [1], [0, 0, 1, 1], [], []>} : vector<32x80xf32>, vector<80x256xf32>, vector<32x256xf32> -> vector<32x256xf32>
    %58 = vector.broadcast %1 : vector<32x1xf32> to vector<32x256xf32>
    %59 = arith.addf %57, %58 : vector<32x256xf32>
    %cst_33 = arith.constant 0.000000e+00 : f32
    %60 = vector.broadcast %cst_33 : f32 to vector<32x256xf32>
    %61 = arith.maximumf %59, %60 : vector<32x256xf32>
    %c1_34 = arith.constant 1 : index
    %c0_35 = arith.constant 0 : index
    %c0_36 = arith.constant 0 : index
    %62 = vector.load %arg4[%c1_34, %c0_35, %c0_36] : memref<2x32x256xf32, #tpu.memory_space<vmem>>, vector<1x32x256xf32>
    %63 = vector.shape_cast %62 : vector<1x32x256xf32> to vector<32x256xf32>
    %64 = vector.shape_cast %61 : vector<32x256xf32> to vector<1x32x256xf32>
    tpu.vector_store %arg4[%c1_34, %c0_35, %c0_36], %64 {strides = array<i32>} : memref<2x32x256xf32, #tpu.memory_space<vmem>>, vector<1x32x256xf32>,
    return
  }
  func.func @transform_0(%arg0: i32) -> (i32, i32, i32) {
    %c0_i32 = arith.constant 0 : i32
    %c0_i32_0 = arith.constant 0 : i32
    %c0_i32_1 = arith.constant 0 : i32
    return %arg0, %c0_i32, %c0_i32_0 : i32, i32, i32
  }
  func.func @transform_1(%arg0: i32) -> (i32, i32) {
    %c0_i32 = arith.constant 0 : i32
    %c0_i32_0 = arith.constant 0 : i32
    %c0_i32_1 = arith.constant 0 : i32
    return %c0_i32, %c0_i32_0 : i32, i32
  }
  func.func @transform_2(%arg0: i32) -> (i32, i32) {
    %c0_i32 = arith.constant 0 : i32
    %c0_i32_0 = arith.constant 0 : i32
    %c0_i32_1 = arith.constant 0 : i32
    return %c0_i32, %c0_i32_0 : i32, i32
  }
  func.func @transform_3(%arg0: i32) -> (i32, i32, i32) {
    %c0_i32 = arith.constant 0 : i32
    %c0_i32_0 = arith.constant 0 : i32
    %c0_i32_1 = arith.constant 0 : i32
    return %arg0, %c0_i32, %c0_i32_0 : i32, i32, i32
  }
}

</mosaic_0001>

<llo_original>
// kernel: tpu_custom_call.1
$region0: #{tpu_custom_call.1}
  #allocation0 [shape = 'u32[]', space=smem, size = 0x4, offset = 0x4, fixed_abs, tag = 'smem constant byte address 0x4 - core index']
  #allocation1 [shape = 'u32[144,128]{1,0:T(1,128)}', space=vmem, size = 0x12000, scoped, tag = 'internal scratch']
  %s0 = inlined_call_operand.hbm [shape: f32[4,16,256], index: 0, kind: input, shape index: {}]
  %s1 = inlined_call_operand.vmem [shape: f32[32,80], index: 1, kind: input, shape index: {}]
  %s2 = inlined_call_operand.vmem [shape: f32[32,1], index: 2, kind: input, shape index: {}]
  %s3 = inlined_call_operand.hbm [shape: f32[4,32,256], index: 3, kind: output, shape index: {}]
  %s4 = sld [smem:[#allocation0]]
  $region49: #{tpu_custom_call.1} parent=0
    _
  %s6 = ssub.s32 1, %s4
  %s7 = scalar_select 0, %s6, %s4
  $region1: #{tpu_custom_call.1} parent=0
    #allocation2 [shape = 'u8[65536]{0}', space=vmem, size = 0x10000, scoped, tag = 'input window, operand 0']
    #allocation3 [shape = 's32[2]{0}', space=sflag, size = 0x8, scoped, tag = 'scoped memory for tpu_custom_call.1']
    #allocation4 [shape = 's32[2]{0}', space=sflag, size = 0x8, scoped, tag = 'scoped memory for tpu_custom_call.1']
    #allocation5 [shape = 'u8[131072]{0}', space=vmem, size = 0x20000, scoped, tag = 'output window, operand 0']
    %8 = vsyncpa [#allocation3], 0
    %s9 = scalar_lea.sflag [#allocation3], 1
    %10 = vsyncpa %s9, 0
    %11 = vsyncpa [#allocation4], 0
    %s12 = scalar_lea.sflag [#allocation4], 1
    %13 = vsyncpa %s12, 0
    loop: start=0, step=1, limit=4
    $region2: #{tpu_custom_call.1} parent=1 // loop_pre_header
      _
    $region3: #{tpu_custom_call.1} parent=1 // loop_header
      %s15 = sphi 0, %s19
      %p16 = scmp.ge.s32.totalorder %s15, 4
      %s25 = sphi 0, %s27
      %s28 = sphi 0, %s25
      %s29 = sphi 0, %s28
      %s45 = sphi 0, %s29
      %s49 = sphi 0, %s49
      %s51 = sphi 0, %s49
      %s52 = sphi 0, %s51
      %s66 = sphi 0, %s52
      %s70 = sphi 0, %s70
      %s72 = sphi 0, %s70
      %s73 = sphi 0, %s72
      %s87 = sphi 0, %s73
      %s93 = sphi 0, %s95
      %s96 = sphi 0, %s93
      %s97 = sphi 0, %s96
      %s113 = sphi 0, %s97
    $region4: #{tpu_custom_call.1} parent=1 // loop_header_branch
      %18 = sbr.rel (%p16) target = $region8
    $region5: #{tpu_custom_call.1} parent=1 // loop_body
      %s20 = ssub.s32 %s15, 1
      %s21 = ssub.s32 %s15, 2
      %s22 = sadd.s32 %s15, 1
      %s23 = ssub.s32 %s15, %s22
      %p24 = scmp.eq.s32.totalorder %s23, 0
      %s26 = sadd.s32 %s25, 1
      %s27 = scalar_select %p24, %s25, %s26
      %p30 = pneg %p24
      %p31 = scmp.eq.s32.totalorder %s15, 1
      %p32 = por %p30, %p31
      %p33 = scmp.ne.s32.totalorder %s25, %s28
      %p34 = scmp.eq.s32.totalorder %s15, 0
      %p35 = por %p33, %p34
      %p36 = scmp.ne.s32.totalorder %s25, %s28
      %p37 = scmp.eq.s32.totalorder %s20, 1
      %p38 = por %p36, %p37
      %p39 = scmp.ne.s32.totalorder %s28, %s29
      %p40 = scmp.eq.s32.totalorder %s20, 0
      %p41 = por %p39, %p40
      %p42 = scmp.ne.s32.totalorder %s28, %s29
      %p43 = scmp.eq.s32.totalorder %s21, 1
      %p44 = por %p42, %p43
      %p46 = scmp.ne.s32.totalorder %s29, %s45
      %p47 = scmp.eq.s32.totalorder %s21, 0
      %p48 = por %p46, %p47
      %s50 = sadd.s32 %s49, 1
      %p53 = scmp.eq.s32.totalorder %s15, 1
      %p54 = scmp.ne.s32.totalorder %s49, %s51
      %p55 = scmp.eq.s32.totalorder %s15, 0
      %p56 = por %p54, %p55
      %p57 = scmp.ne.s32.totalorder %s49, %s51
      %p58 = scmp.eq.s32.totalorder %s20, 1
      %p59 = por %p57, %p58
      %p60 = scmp.ne.s32.totalorder %s51, %s52
      %p61 = scmp.eq.s32.totalorder %s20, 0
      %p62 = por %p60, %p61
      %p63 = scmp.ne.s32.totalorder %s51, %s52
      %p64 = scmp.eq.s32.totalorder %s21, 1
      %p65 = por %p63, %p64
      %p67 = scmp.ne.s32.totalorder %s52, %s66
      %p68 = scmp.eq.s32.totalorder %s21, 0
      %p69 = por %p67, %p68
      %s71 = sadd.s32 %s70, 1
      %p74 = scmp.eq.s32.totalorder %s15, 1
      %p75 = scmp.ne.s32.totalorder %s70, %s72
      %p76 = scmp.eq.s32.totalorder %s15, 0
      %p77 = por %p75, %p76
      %p78 = scmp.ne.s32.totalorder %s70, %s72
      %p79 = scmp.eq.s32.totalorder %s20, 1
      %p80 = por %p78, %p79
      %p81 = scmp.ne.s32.totalorder %s72, %s73
      %p82 = scmp.eq.s32.totalorder %s20, 0
      %p83 = por %p81, %p82
      %p84 = scmp.ne.s32.totalorder %s72, %s73
      %p85 = scmp.eq.s32.totalorder %s21, 1
      %p86 = por %p84, %p85
      %p88 = scmp.ne.s32.totalorder %s73, %s87
      %p89 = scmp.eq.s32.totalorder %s21, 0
      %p90 = por %p88, %p89
      %s91 = ssub.s32 %s15, %s22
      %p92 = scmp.eq.s32.totalorder %s91, 0
      %s94 = sadd.s32 %s93, 1
      %s95 = scalar_select %p92, %s93, %s94
      %p98 = pneg %p92
      %p99 = scmp.eq.s32.totalorder %s15, 1
      %p100 = por %p98, %p99
      %p101 = scmp.ne.s32.totalorder %s93, %s96
      %p102 = scmp.eq.s32.totalorder %s15, 0
      %p103 = por %p101, %p102
      %p104 = scmp.ne.s32.totalorder %s93, %s96
      %p105 = scmp.eq.s32.totalorder %s20, 1
      %p106 = por %p104, %p105
      %p107 = scmp.ne.s32.totalorder %s96, %s97
      %p108 = scmp.eq.s32.totalorder %s20, 0
      %p109 = por %p107, %p108
      %p110 = scmp.ne.s32.totalorder %s96, %s97
      %p111 = scmp.eq.s32.totalorder %s21, 1
      %p112 = por %p110, %p111
      %p114 = scmp.ne.s32.totalorder %s97, %s113
      %p115 = scmp.eq.s32.totalorder %s21, 0
      %p116 = por %p114, %p115
      %p117 = scmp.le.s32.totalorder 1, %s15
      %p118 = scmp.lt.s32.totalorder %s15, 3
      %p119 = pnand %p117, %p118
      %p120 = pneg %p119
      // Predicated region
      $region9: #{tpu_custom_call.1} parent=5 // pred_check
        _
      $region10: #{tpu_custom_call.1} parent=5 // pred_check_branch
        %122 = sbr.rel (%p119) target = $region12
      $region11: #{tpu_custom_call.1} parent=5 // pred_region
        %s123 = ssub.s32 %s15, 1
        // Predicated region
        $region13: #{tpu_custom_call.1} parent=11 // pred_check
          %p124 = pneg %p62
        $region14: #{tpu_custom_call.1} parent=11 // pred_check_branch
          %126 = sbr.rel (%p124) target = $region16
        $region15: #{tpu_custom_call.1} parent=11 // pred_region
          _
        $region16: #{tpu_custom_call.1} parent=11 // pred_fallthru
          _
        // Predicated region
        $region17: #{tpu_custom_call.1} parent=11 // pred_check
          %p127 = pneg %p83
        $region18: #{tpu_custom_call.1} parent=11 // pred_check_branch
          %129 = sbr.rel (%p127) target = $region20
        $region19: #{tpu_custom_call.1} parent=11 // pred_region
          _
        $region20: #{tpu_custom_call.1} parent=11 // pred_fallthru
          _
      $region12: #{tpu_custom_call.1} parent=5 // pred_fallthru
        _
      %p130 = scmp.lt.s32.totalorder %s15, 2
      // Predicated region
      $region21: #{tpu_custom_call.1} parent=5 // pred_check
        %p131 = pneg %p130
      $region22: #{tpu_custom_call.1} parent=5 // pred_check_branch
        %133 = sbr.rel (%p131) target = $region24
      $region23: #{tpu_custom_call.1} parent=5 // pred_region
        // Predicated region
        $region25: #{tpu_custom_call.1} parent=23 // pred_check
          %p134 = pneg %p35
        $region26: #{tpu_custom_call.1} parent=23 // pred_check_branch
          %136 = sbr.rel (%p134) target = $region28
        $region27: #{tpu_custom_call.1} parent=23 // pred_region
          %s137 = sand.u32 %s25, 1
          %s138 = scalar_lea.sflag [#allocation3], %s137
          %s139 = sand.u32 %s25, 1
          %s140 = smul.addr %s139, 64
          %s141 = scalar_lea.vmem [#allocation2], %s140
          %s142 = smul.u32 2, %s15
          %s144 = ssub.s32 1024, 1024
          %145 = vsyncadd %s138, %s144
          %s146 = smul.addr %s142, 4
          %s147 = smul.addr %s146, 128
          %s148 = scalar_lea.hbm %s0, %s147
          %s149 = sshll.u32 %s141, 4
          %s150 = int_to_ptr.vmem [resolvable:$true] %s149
          %155 = dma.hbm_to_vmem [thread:$0]  %s148, 1024, %s150, %s138, 256, 256, 16
        $region28: #{tpu_custom_call.1} parent=23 // pred_fallthru
          _
      $region24: #{tpu_custom_call.1} parent=5 // pred_fallthru
        _
      %p156 = scmp.le.s32.totalorder 1, %s15
      %p157 = scmp.lt.s32.totalorder %s15, 3
      %p158 = pnand %p156, %p157
      %p159 = pneg %p158
      // Predicated region
      $region29: #{tpu_custom_call.1} parent=5 // pred_check
        _
      $region30: #{tpu_custom_call.1} parent=5 // pred_check_branch
        %161 = sbr.rel (%p158) target = $region32
      $region31: #{tpu_custom_call.1} parent=5 // pred_region
        %s162 = ssub.s32 %s15, 1
        %s163 = sand.u32 %s28, 1
        %s164 = scalar_lea.sflag [#allocation3], %s163
        %s165 = sand.u32 %s28, 1
        %s166 = smul.addr %s165, 64
        %s167 = scalar_lea.vmem [#allocation2], %s166
        // Predicated region
        $region33: #{tpu_custom_call.1} parent=31 // pred_check
          %p168 = pneg %p41
        $region34: #{tpu_custom_call.1} parent=31 // pred_check_branch
          %170 = sbr.rel (%p168) target = $region36
        $region35: #{tpu_custom_call.1} parent=31 // pred_region
          %171 = dma.done %s164, 1024
        $region36: #{tpu_custom_call.1} parent=31 // pred_fallthru
          _
        %s172 = sand.u32 %s28, 1
        %s173 = scalar_lea.sflag [#allocation3], %s172
        %s174 = sand.u32 %s28, 1
        %s175 = smul.addr %s174, 64
        %s176 = scalar_lea.vmem [#allocation2], %s175
        %p177 = pneg %p41
        %p178 = pneg %p38
        %p179 = pneg %p62
        %p180 = pneg %p59
        %p181 = pneg %p83
        %p182 = pneg %p80
        %p183 = pneg %p109
        %p184 = pneg %p106
        %s185 = sand.u32 %s96, 1
        %s186 = scalar_lea.sflag [#allocation4], %s185
        %s187 = sand.u32 %s96, 1
        %s188 = smul.addr %s187, 128
        %s189 = scalar_lea.vmem [#allocation5], %s188
        %s190 = smul.u32 2, %s20
        %s191 = smul.u32 2, %s20
        %v192 = vld [vmem:[%s1] sm:$0xff]
        %v193 = vld [vmem:[%s1 + $0x8] sm:$0xff]
        %v194 = vld [vmem:[%s1 + $0x10] sm:$0xff]
        %v195 = vld [vmem:[%s1 + $0x18] sm:$0xff]
        %v196 = vld [vmem:[%s2] sm:$0xff]
        %v197 = vld [vmem:[%s2 + $0x8] sm:$0xff]
        %v198 = vld [vmem:[%s2 + $0x10] sm:$0xff]
        %v199 = vld [vmem:[%s2 + $0x18] sm:$0xff]
        %v200 = vlaneseq
        %v201 = vand.u32 %v200, 127
        %v202 = vadd.s32 %v201, 128
        %v203 = vld [vmem:[%s167] sm:$0xff]
        %v204 = vld [vmem:[%s167 + $0x8] sm:$0xff]
        %v205 = vld [vmem:[%s167 + $0x10] sm:$0xff]
        %v206 = vld [vmem:[%s167 + $0x18] sm:$0xff]
        %207 = vrot.lane.b32.xlu0 %v203, 2
        %v208 = vpop.permute.xlu0 %207
        %209 = vrot.lane.b32.xlu0 %v205, 2
        %v210 = vpop.permute.xlu0 %209
        %211 = vrot.lane.b32.xlu0 %v204, 2
        %v212 = vpop.permute.xlu0 %211
        %213 = vrot.lane.b32.xlu0 %v206, 2
        %v214 = vpop.permute.xlu0 %213
        %vm215 = vcmp.lt.s32.totalorder %v201, 2
        %v216 = vsel %vm215, %v208, %v212
        %v217 = vsel %vm215, %v210, %v214
        %v218 = vsel %vm215, %v212, %v208
        %v219 = vsel %vm215, %v214, %v210
        %vm220 = vcmp.ge.s32.totalorder %v201, 2
        %vm221 = vcmp.ge.s32.totalorder %v202, 2
        %v222 = vsel %vm220, %v218, 0.0
        %v223 = vsel %vm221, %v216, 0.0
        %v224 = vsel %vm220, %v219, 0.0
        %v225 = vsel %vm221, %v217, 0.0
        %226 = vrot.lane.b32.xlu0 %v203, 1
        %v227 = vpop.permute.xlu0 %226
        %228 = vrot.lane.b32.xlu0 %v205, 1
        %v229 = vpop.permute.xlu0 %228
        %230 = vrot.lane.b32.xlu0 %v204, 1
        %v231 = vpop.permute.xlu0 %230
        %232 = vrot.lane.b32.xlu0 %v206, 1
        %v233 = vpop.permute.xlu0 %232
        %vm234 = vcmp.lt.s32.totalorder %v201, 1
        %v235 = vsel %vm234, %v227, %v231
        %v236 = vsel %vm234, %v229, %v233
        %v237 = vsel %vm234, %v231, %v227
        %v238 = vsel %vm234, %v233, %v229
        %vm239 = vcmp.ge.s32.totalorder %v201, 1
        %vm240 = vcmp.ge.s32.totalorder %v202, 1
        %v241 = vsel %vm239, %v237, 0.0
        %v242 = vsel %vm240, %v235, 0.0
        %v243 = vsel %vm239, %v238, 0.0
        %v244 = vsel %vm240, %v236, 0.0
        %245 = vrot.lane.b32.xlu0 %v203, 127
        %v246 = vpop.permute.xlu0 %245
        %247 = vrot.lane.b32.xlu0 %v205, 127
        %v248 = vpop.permute.xlu0 %247
        %249 = vrot.lane.b32.xlu0 %v204, 127
        %v250 = vpop.permute.xlu0 %249
        %251 = vrot.lane.b32.xlu0 %v206, 127
        %v252 = vpop.permute.xlu0 %251
        %vm253 = vcmp.lt.s32.totalorder %v201, 127
        %v254 = vsel %vm253, %v246, %v250
        %v255 = vsel %vm253, %v248, %v252
        %v256 = vsel %vm253, %v250, %v246
        %v257 = vsel %vm253, %v252, %v248
        %vm258 = vcmp.lt.s32.totalorder %v201, 255
        %vm259 = vcmp.lt.s32.totalorder %v202, 255
        %v260 = vsel %vm258, %v254, 0.0
        %v261 = vsel %vm259, %v256, 0.0
        %v262 = vsel %vm258, %v255, 0.0
        %v263 = vsel %vm259, %v257, 0.0
        %264 = vrot.lane.b32.xlu0 %v203, 126
        %v265 = vpop.permute.xlu0 %264
        %266 = vrot.lane.b32.xlu0 %v205, 126
        %v267 = vpop.permute.xlu0 %266
        %268 = vrot.lane.b32.xlu0 %v204, 126
        %v269 = vpop.permute.xlu0 %268
        %270 = vrot.lane.b32.xlu0 %v206, 126
        %v271 = vpop.permute.xlu0 %270
        %vm272 = vcmp.lt.s32.totalorder %v201, 126
        %v273 = vsel %vm272, %v265, %v269
        %v274 = vsel %vm272, %v267, %v271
        %v275 = vsel %vm272, %v269, %v265
        %v276 = vsel %vm272, %v271, %v267
        %vm277 = vcmp.lt.s32.totalorder %v201, 254
        %vm278 = vcmp.lt.s32.totalorder %v202, 254
        %v279 = vsel %vm277, %v273, 0.0
        %v280 = vsel %vm278, %v275, 0.0
        %v281 = vsel %vm277, %v274, 0.0
        %v282 = vsel %vm278, %v276, 0.0
        %284 = vset.pattern.permute.xlu0 0
        %285 = vperm.xlu0 %284, %v196
        %v286 = vpop.permute.xlu0 %285
        %289 = vset.pattern.permute.xlu0 0
        %290 = vperm.xlu0 %289, %v197
        %v291 = vpop.permute.xlu0 %290
        %294 = vset.pattern.permute.xlu0 0
        %295 = vperm.xlu0 %294, %v198
        %v296 = vpop.permute.xlu0 %295
        %299 = vset.pattern.permute.xlu0 0
        %300 = vperm.xlu0 %299, %v199
        %v301 = vpop.permute.xlu0 %300
        %vm303 = vcmask 654336
        %v305 = vsel %vm303, %v192, 0
        %v308 = vsel %vm303, %v193, 0
        %v311 = vsel %vm303, %v194, 0
        %v314 = vsel %vm303, %v195, 0
        %316 = vmatprep.subr.mxu0 %v223
        %317 = vmatpush1.msra.mxu0 %v222
        %318 = vmatprep.subr.mxu0 %v225
        %319 = vmatpush1.msra.mxu0 %v224
        %320 = vmatprep.subr.mxu0 %v242
        %321 = vmatpush1.msra.mxu0 %v241
        %322 = vmatprep.subr.mxu0 %v244
        %323 = vmatpush1.msra.mxu0 %v243
        %324 = vmatprep.subr.mxu0 %v204
        %325 = vmatpush1.msra.mxu0 %v203
        %326 = vmatprep.subr.mxu0 %v206
        %327 = vmatpush1.msra.mxu0 %v205
        %328 = vmatprep.subr.mxu0 %v261
        %329 = vmatpush1.msra.mxu0 %v260
        %330 = vmatprep.subr.mxu0 %v263
        %331 = vmatpush1.msra.mxu0 %v262
        %332 = vmatprep.subr.mxu0 %v280
        %333 = vmatpush1.msra.mxu0 %v279
        %334 = vmatprep.subr.mxu0 %v282
        %335 = vmatpush1.msra.mxu0 %v281
        %336 = vmatprep.subr.mxu0 0.0
        %337 = vmatpush1.msra.mxu0 0.0
        %338 = vmatprep.subr.mxu0 0.0
        %339 = vmatpush1.msra.mxu0 0.0
        %340 = vmatprep.subr.mxu0 0.0
        %341 = vmatpush1.msra.mxu0 0.0
        %342 = vmatprep.subr.mxu0 0.0
        %343 = vmatpush1.msra.mxu0 0.0
        %344 = vmatprep.subr.mxu0 0.0
        %345 = vmatpush1.msra.mxu0 0.0
        %346 = vmatprep.subr.mxu0 0.0
        %347 = vmatpush1.msra.mxu0 0.0
        %348 = vmatprep.subr.mxu0 0.0
        %349 = vmatpush1.msra.mxu0 0.0
        %350 = vmatprep.subr.mxu0 0.0
        %351 = vmatpush1.msra.mxu0 0.0
        %352 = vmatprep.subr.mxu0 0.0
        %353 = vmatpush1.msra.mxu0 0.0
        %354 = vmatprep.subr.mxu0 0.0
        %355 = vmatpush1.msra.mxu0 0.0
        %356 = vmatprep.subr.mxu0 0.0
        %357 = vmatpush1.msra.mxu0 0.0
        %358 = vmatprep.subr.mxu0 0.0
        %359 = vmatpush1.msra.mxu0 0.0
        %360 = vmatprep.subr.mxu0 0.0
        %361 = vmatpush1.msra.mxu0 0.0
        %362 = vmatprep.subr.mxu0 0.0
        %363 = vmatpush1.msra.mxu0 0.0
        %364 = vmatprep.subr.mxu0 0.0
        %365 = vmatpush1.msra.mxu0 0.0
        %366 = vmatprep.subr.mxu0 0.0
        %367 = vmatpush1.msra.mxu0 0.0
        %368 = vmatprep.subr.mxu0 0.0
        %369 = vmatpush1.msra.mxu0 0.0
        %370 = vmatprep.subr.mxu0 0.0
        %371 = vmatpush1.msra.mxu0 0.0
        %372 = vmatprep.subr.mxu0 0.0
        %373 = vmatpush1.msra.mxu0 0.0
        %374 = vmatprep.subr.mxu0 0.0
        %375 = vmatpush1.msra.mxu0 0.0
        %376 = vmatprep.subr.mxu0 0.0
        %377 = vmatpush1.msra.mxu0 0.0
        %378 = vmatprep.subr.mxu0 0.0
        %379 = vmatpush1.msra.mxu0 0.0
        %380 = vmatprep.mubr.f32.mxu0 0.0
        %381 = vmatmul.mubr.f32.gmra.mrb[0].mxu0 %v305
        %v382 = vpop.f32.mrb[0].mxu0
        %v383 = vadd.f32 %v286, %v382
        %v384 = vpop.f32.mrb[0].mxu0
        %v385 = vadd.f32 %v286, %v384
        %386 = vmatprep.mubr.f32.mxu0 0.0
        %387 = vmatmul.mubr.f32.gmra.mrb[0].mxu0 %v308
        %v388 = vpop.f32.mrb[0].mxu0
        %v389 = vadd.f32 %v291, %v388
        %v390 = vpop.f32.mrb[0].mxu0
        %v391 = vadd.f32 %v291, %v390
        %392 = vmatprep.mubr.f32.mxu0 0.0
        %393 = vmatmul.mubr.f32.gmra.mrb[0].mxu0 %v311
        %v394 = vpop.f32.mrb[0].mxu0
        %v395 = vadd.f32 %v296, %v394
        %v396 = vpop.f32.mrb[0].mxu0
        %v397 = vadd.f32 %v296, %v396
        %398 = vmatprep.mubr.f32.mxu0 0.0
        %399 = vmatmul.mubr.f32.gmra.mrb[0].mxu0 %v314
        %v400 = vpop.f32.mrb[0].mxu0
        %v401 = vadd.f32 %v301, %v400
        %v402 = vpop.f32.mrb[0].mxu0
        %v403 = vadd.f32 %v301, %v402
        %404 = vdwg.mxu0
        %v405 = vmax.f32 %v383, 0.0
        %v406 = vmax.f32 %v385, 0.0
        %v407 = vmax.f32 %v389, 0.0
        %v408 = vmax.f32 %v391, 0.0
        %v409 = vmax.f32 %v395, 0.0
        %v410 = vmax.f32 %v397, 0.0
        %v411 = vmax.f32 %v401, 0.0
        %v412 = vmax.f32 %v403, 0.0
        %413 = vst [vmem:[%s189] sm:$0xff] %v405
        %414 = vst [vmem:[%s189 + $0x8] sm:$0xff] %v406
        %415 = vst [vmem:[%s189 + $0x10] sm:$0xff] %v407
        %416 = vst [vmem:[%s189 + $0x18] sm:$0xff] %v408
        %417 = vst [vmem:[%s189 + $0x20] sm:$0xff] %v409
        %418 = vst [vmem:[%s189 + $0x28] sm:$0xff] %v410
        %419 = vst [vmem:[%s189 + $0x30] sm:$0xff] %v411
        %420 = vst [vmem:[%s189 + $0x38] sm:$0xff] %v412
        %s421 = scalar_lea.vmem %s167, 32 [#allocation2]
        %v422 = vld [vmem:[%s421] sm:$0xff]
        %v423 = vld [vmem:[%s421 + $0x8] sm:$0xff]
        %v424 = vld [vmem:[%s421 + $0x10] sm:$0xff]
        %v425 = vld [vmem:[%s421 + $0x18] sm:$0xff]
        %426 = vrot.lane.b32.xlu0 %v422, 2
        %v427 = vpop.permute.xlu0 %426
        %428 = vrot.lane.b32.xlu0 %v424, 2
        %v429 = vpop.permute.xlu0 %428
        %430 = vrot.lane.b32.xlu0 %v423, 2
        %v431 = vpop.permute.xlu0 %430
        %432 = vrot.lane.b32.xlu0 %v425, 2
        %v433 = vpop.permute.xlu0 %432
        %v434 = vsel %vm215, %v427, %v431
        %v435 = vsel %vm215, %v429, %v433
        %v436 = vsel %vm215, %v431, %v427
        %v437 = vsel %vm215, %v433, %v429
        %v438 = vsel %vm220, %v436, 0.0
        %v439 = vsel %vm221, %v434, 0.0
        %v440 = vsel %vm220, %v437, 0.0
        %v441 = vsel %vm221, %v435, 0.0
        %442 = vrot.lane.b32.xlu0 %v422, 1
        %v443 = vpop.permute.xlu0 %442
        %444 = vrot.lane.b32.xlu0 %v424, 1
        %v445 = vpop.permute.xlu0 %444
        %446 = vrot.lane.b32.xlu0 %v423, 1
        %v447 = vpop.permute.xlu0 %446
        %448 = vrot.lane.b32.xlu0 %v425, 1
        %v449 = vpop.permute.xlu0 %448
        %v450 = vsel %vm234, %v443, %v447
        %v451 = vsel %vm234, %v445, %v449
        %v452 = vsel %vm234, %v447, %v443
        %v453 = vsel %vm234, %v449, %v445
        %v454 = vsel %vm239, %v452, 0.0
        %v455 = vsel %vm240, %v450, 0.0
        %v456 = vsel %vm239, %v453, 0.0
        %v457 = vsel %vm240, %v451, 0.0
        %458 = vrot.lane.b32.xlu0 %v422, 127
        %v459 = vpop.permute.xlu0 %458
        %460 = vrot.lane.b32.xlu0 %v424, 127
        %v461 = vpop.permute.xlu0 %460
        %462 = vrot.lane.b32.xlu0 %v423, 127
        %v463 = vpop.permute.xlu0 %462
        %464 = vrot.lane.b32.xlu0 %v425, 127
        %v465 = vpop.permute.xlu0 %464
        %v466 = vsel %vm253, %v459, %v463
        %v467 = vsel %vm253, %v461, %v465
        %v468 = vsel %vm253, %v463, %v459
        %v469 = vsel %vm253, %v465, %v461
        %v470 = vsel %vm258, %v466, 0.0
        %v471 = vsel %vm259, %v468, 0.0
        %v472 = vsel %vm258, %v467, 0.0
        %v473 = vsel %vm259, %v469, 0.0
        %474 = vrot.lane.b32.xlu0 %v422, 126
        %v475 = vpop.permute.xlu0 %474
        %476 = vrot.lane.b32.xlu0 %v424, 126
        %v477 = vpop.permute.xlu0 %476
        %478 = vrot.lane.b32.xlu0 %v423, 126
        %v479 = vpop.permute.xlu0 %478
        %480 = vrot.lane.b32.xlu0 %v425, 126
        %v481 = vpop.permute.xlu0 %480
        %v482 = vsel %vm272, %v475, %v479
        %v483 = vsel %vm272, %v477, %v481
        %v484 = vsel %vm272, %v479, %v475
        %v485 = vsel %vm272, %v481, %v477
        %v486 = vsel %vm277, %v482, 0.0
        %v487 = vsel %vm278, %v484, 0.0
        %v488 = vsel %vm277, %v483, 0.0
        %v489 = vsel %vm278, %v485, 0.0
        %490 = vmatprep.subr.mxu0 %v439
        %491 = vmatpush1.msra.mxu0 %v438
        %492 = vmatprep.subr.mxu0 %v441
        %493 = vmatpush1.msra.mxu0 %v440
        %494 = vmatprep.subr.mxu0 %v455
        %495 = vmatpush1.msra.mxu0 %v454
        %496 = vmatprep.subr.mxu0 %v457
        %497 = vmatpush1.msra.mxu0 %v456
        %498 = vmatprep.subr.mxu0 %v423
        %499 = vmatpush1.msra.mxu0 %v422
        %500 = vmatprep.subr.mxu0 %v425
        %501 = vmatpush1.msra.mxu0 %v424
        %502 = vmatprep.subr.mxu0 %v471
        %503 = vmatpush1.msra.mxu0 %v470
        %504 = vmatprep.subr.mxu0 %v473
        %505 = vmatpush1.msra.mxu0 %v472
        %506 = vmatprep.subr.mxu0 %v487
        %507 = vmatpush1.msra.mxu0 %v486
        %508 = vmatprep.subr.mxu0 %v489
        %509 = vmatpush1.msra.mxu0 %v488
        %510 = vmatprep.subr.mxu0 0.0
        %511 = vmatpush1.msra.mxu0 0.0
        %512 = vmatprep.subr.mxu0 0.0
        %513 = vmatpush1.msra.mxu0 0.0
        %514 = vmatprep.subr.mxu0 0.0
        %515 = vmatpush1.msra.mxu0 0.0
        %516 = vmatprep.subr.mxu0 0.0
        %517 = vmatpush1.msra.mxu0 0.0
        %518 = vmatprep.subr.mxu0 0.0
        %519 = vmatpush1.msra.mxu0 0.0
        %520 = vmatprep.subr.mxu0 0.0
        %521 = vmatpush1.msra.mxu0 0.0
        %522 = vmatprep.subr.mxu0 0.0
        %523 = vmatpush1.msra.mxu0 0.0
        %524 = vmatprep.subr.mxu0 0.0
        %525 = vmatpush1.msra.mxu0 0.0
        %526 = vmatprep.subr.mxu0 0.0
        %527 = vmatpush1.msra.mxu0 0.0
        %528 = vmatprep.subr.mxu0 0.0
        %529 = vmatpush1.msra.mxu0 0.0
        %530 = vmatprep.subr.mxu0 0.0
        %531 = vmatpush1.msra.mxu0 0.0
        %532 = vmatprep.subr.mxu0 0.0
        %533 = vmatpush1.msra.mxu0 0.0
        %534 = vmatprep.subr.mxu0 0.0
        %535 = vmatpush1.msra.mxu0 0.0
        %536 = vmatprep.subr.mxu0 0.0
        %537 = vmatpush1.msra.mxu0 0.0
        %538 = vmatprep.subr.mxu0 0.0
        %539 = vmatpush1.msra.mxu0 0.0
        %540 = vmatprep.subr.mxu0 0.0
        %541 = vmatpush1.msra.mxu0 0.0
        %542 = vmatprep.subr.mxu0 0.0
        %543 = vmatpush1.msra.mxu0 0.0
        %544 = vmatprep.subr.mxu0 0.0
        %545 = vmatpush1.msra.mxu0 0.0
        %546 = vmatprep.subr.mxu0 0.0
        %547 = vmatpush1.msra.mxu0 0.0
        %548 = vmatprep.subr.mxu0 0.0
        %549 = vmatpush1.msra.mxu0 0.0
        %550 = vmatprep.subr.mxu0 0.0
        %551 = vmatpush1.msra.mxu0 0.0
        %552 = vmatprep.subr.mxu0 0.0
        %553 = vmatpush1.msra.mxu0 0.0
        %554 = vmatprep.mubr.f32.mxu0 0.0
        %555 = vmatmul.mubr.f32.gmra.mrb[0].mxu0 %v305
        %v556 = vpop.f32.mrb[0].mxu0
        %v557 = vadd.f32 %v286, %v556
        %v558 = vpop.f32.mrb[0].mxu0
        %v559 = vadd.f32 %v286, %v558
        %560 = vmatprep.mubr.f32.mxu0 0.0
        %561 = vmatmul.mubr.f32.gmra.mrb[0].mxu0 %v308
        %v562 = vpop.f32.mrb[0].mxu0
        %v563 = vadd.f32 %v291, %v562
        %v564 = vpop.f32.mrb[0].mxu0
        %v565 = vadd.f32 %v291, %v564
        %566 = vmatprep.mubr.f32.mxu0 0.0
        %567 = vmatmul.mubr.f32.gmra.mrb[0].mxu0 %v311
        %v568 = vpop.f32.mrb[0].mxu0
        %v569 = vadd.f32 %v296, %v568
        %v570 = vpop.f32.mrb[0].mxu0
        %v571 = vadd.f32 %v296, %v570
        %572 = vmatprep.mubr.f32.mxu0 0.0
        %573 = vmatmul.mubr.f32.gmra.mrb[0].mxu0 %v314
        %v574 = vpop.f32.mrb[0].mxu0
        %v575 = vadd.f32 %v301, %v574
        %v576 = vpop.f32.mrb[0].mxu0
        %v577 = vadd.f32 %v301, %v576
        %578 = vdwg.mxu0
        %v579 = vmax.f32 %v557, 0.0
        %v580 = vmax.f32 %v559, 0.0
        %v581 = vmax.f32 %v563, 0.0
        %v582 = vmax.f32 %v565, 0.0
        %v583 = vmax.f32 %v569, 0.0
        %v584 = vmax.f32 %v571, 0.0
        %v585 = vmax.f32 %v575, 0.0
        %v586 = vmax.f32 %v577, 0.0
        %s587 = scalar_lea.vmem %s189, 64 [#allocation5]
        %588 = vst [vmem:[%s587] sm:$0xff] %v579
        %589 = vst [vmem:[%s587 + $0x8] sm:$0xff] %v580
        %590 = vst [vmem:[%s587 + $0x10] sm:$0xff] %v581
        %591 = vst [vmem:[%s587 + $0x18] sm:$0xff] %v582
        %592 = vst [vmem:[%s587 + $0x20] sm:$0xff] %v583
        %593 = vst [vmem:[%s587 + $0x28] sm:$0xff] %v584
        %594 = vst [vmem:[%s587 + $0x30] sm:$0xff] %v585
        %595 = vst [vmem:[%s587 + $0x38] sm:$0xff] %v586
        %s596 = sand.u32 %s96, 1
        %s597 = scalar_lea.sflag [#allocation4], %s596
        %s598 = sand.u32 %s96, 1
        %s599 = smul.addr %s598, 128
        %s600 = scalar_lea.vmem [#allocation5], %s599
        // Predicated region
        $region37: #{tpu_custom_call.1} parent=31 // pred_check
          %p601 = pneg %p106
        $region38: #{tpu_custom_call.1} parent=31 // pred_check_branch
          %603 = sbr.rel (%p601) target = $region40
        $region39: #{tpu_custom_call.1} parent=31 // pred_region
          %s604 = smul.u32 2, %s20
          %s606 = ssub.s32 2048, 2048
          %607 = vsyncadd %s597, %s606
          %s608 = smul.addr %s604, 8
          %s609 = smul.addr %s608, 128
          %s610 = scalar_lea.hbm %s3, %s609
          %s611 = sshll.u32 %s600, 4
          %s612 = int_to_ptr.vmem [resolvable:$true] %s611
          %617 = dma.vmem_to_hbm [thread:$0]  %s612, 2048, %s610, %s597, 256, 256, 16
        $region40: #{tpu_custom_call.1} parent=31 // pred_fallthru
          _
      $region32: #{tpu_custom_call.1} parent=5 // pred_fallthru
        _
      %p618 = scmp.le.s32.totalorder 2, %s15
      // Predicated region
      $region41: #{tpu_custom_call.1} parent=5 // pred_check
        %p619 = pneg %p618
      $region42: #{tpu_custom_call.1} parent=5 // pred_check_branch
        %621 = sbr.rel (%p619) target = $region44
      $region43: #{tpu_custom_call.1} parent=5 // pred_region
        %s622 = ssub.s32 %s15, 2
        // Predicated region
        $region45: #{tpu_custom_call.1} parent=43 // pred_check
          %p623 = pneg %p112
        $region46: #{tpu_custom_call.1} parent=43 // pred_check_branch
          %625 = sbr.rel (%p623) target = $region48
        $region47: #{tpu_custom_call.1} parent=43 // pred_region
          %s626 = sand.u32 %s97, 1
          %s627 = scalar_lea.sflag [#allocation4], %s626
          %s628 = sand.u32 %s97, 1
          %s629 = smul.addr %s628, 128
          %s630 = scalar_lea.vmem [#allocation5], %s629
          %631 = dma.done %s627, 2048
        $region48: #{tpu_custom_call.1} parent=43 // pred_fallthru
          _
      $region44: #{tpu_custom_call.1} parent=5 // pred_fallthru
        _
    $region6: #{tpu_custom_call.1} parent=1 // loop_footer
      %s19 = sadd.s32 1, %s15
    $region7: #{tpu_custom_call.1} parent=1 // loop_footer_branch
      %14 = sbr.rel target = $region3
    $region8: #{tpu_custom_call.1} parent=1 // loop_exit
      _
    %632 = vsyncpa [#allocation3], 1
    %s633 = scalar_lea.sflag [#allocation3], 1
    %634 = vsyncpa %s633, 1
    %635 = vsyncpa [#allocation4], 1
    %s636 = scalar_lea.sflag [#allocation4], 1
    %637 = vsyncpa %s636, 1

</llo_original>
